<compile_context>
chip_gen: v7x
topology: tpu7x:2x2x1
jax: 0.10.0
libtpu: 0.0.40
codegen_flags: <defaults>
</compile_context>

<pallas_src>
import math
import functools

import jax
import jax.numpy as jnp
from jax.experimental import pallas as pl
from jax.experimental.pallas import tpu as pltpu


def _round_up(n, m):
    return ((n + m - 1) // m) * m


_CHUNK = 128  # batch lanes processed per unrolled inner step (bounds vreg pressure)


def _mlp_kernel(x_ref, w1_ref, b1_ref, w2_ref, b2_ref, w3_ref, o_ref):
    # x_ref: (TB, 10) native row-major batch tile (batch on sublanes in VMEM).
    # o_ref: (1, TB)  lane-dense output slab (batch on the 128-lane axis).
    # Hoist the (tiny) weight/bias loads out of the chunk loop (loop-invariant).
    w1 = w1_ref[...]        # (40, 10)
    b1 = b1_ref[...]        # (40, 1)
    w2 = w2_ref[...]        # (40, 40)
    b2 = b2_ref[...]        # (40, 1)
    w3 = w3_ref[...]        # (1, 40)

    tb = x_ref.shape[0]
    chunk = min(_CHUNK, tb)

    # Fully-unrolled static chunk loop over the batch tile: keeps the live set
    # (x chunk + h1 + h2 + bias broadcasts) comfortably inside the vreg file
    # while the grid-level x-tile DMA stays large.
    for j in range(tb // chunk):
        start = j * chunk
        x_c = x_ref[pl.ds(start, chunk), :]              # (chunk, 10)

        # Layer 1: Linear(10, 40) + ReLU.  NT dot_general (contract feature dim
        # of both operands) computes w1 @ x_c^T -> (40, chunk): the batch lands
        # on the lane axis with no wrapper-side or VPU transpose.
        h1 = jax.lax.dot_general(
            w1, x_c, (((1,), (1,)), ((), ())),
            preferred_element_type=jnp.float32)
        h1 = jnp.maximum(h1 + b1, 0.0)

        # Layer 2: Linear(40, 40) + ReLU                 -> (40, chunk)
        h2 = jnp.dot(w2, h1, preferred_element_type=jnp.float32)
        h2 = jnp.maximum(h2 + b2, 0.0)

        # Layer 3: Linear(40, 1, bias=False) + Sigmoid   -> (1, chunk), lane-dense.
        logits = jnp.dot(w3, h2, preferred_element_type=jnp.float32)
        o_ref[:, pl.ds(start, chunk)] = jax.nn.sigmoid(logits).astype(o_ref.dtype)


@functools.partial(jax.jit, static_argnames=("block_b",))
def mlp_forward(x, params, block_b=2048):
    """x: (B, 10) float32. Returns (B, 1) float32, matching the torch module."""
    w1, b1, w2, b2, w3 = params
    B, F = x.shape

    # Batch tiling: tile must be a multiple of 128 lanes (guard arbitrary block_b).
    block_b = max(128, _round_up(block_b, 128))
    # v7x shards the "parallel" grid axis over its 2 TensorCores: keep >= 2 grid
    # steps whenever the batch spans more than one 128-lane tile.
    half = _round_up(-(-B // 2), 128)
    tb = min(block_b, max(128, half))
    b_pad = _round_up(B, tb)
    n_blocks = b_pad // tb

    x = x.astype(jnp.float32)
    if b_pad != B:
        # Contiguous row-pad for ragged tails only (no transpose round trip);
        # padded rows are computed column-independently and sliced off below.
        x = jnp.pad(x, ((0, b_pad - B), (0, 0)))

    const = lambda arr: pl.BlockSpec(arr.shape, lambda i: (0, 0))   # VMEM-resident

    cost = pl.CostEstimate(
        flops=2 * b_pad * (F * 40 + 40 * 40 + 40),
        transcendentals=b_pad,                       # sigmoid
        bytes_accessed=4 * (b_pad * (F + 1) + 40 * F + 40 + 40 * 40 + 40 + 40),
    )

    out = pl.pallas_call(
        _mlp_kernel,
        out_shape=jax.ShapeDtypeStruct((1, b_pad), jnp.float32),
        grid_spec=pltpu.PrefetchScalarGridSpec(
            num_scalar_prefetch=0,
            grid=(n_blocks,),
            in_specs=[
                pl.BlockSpec((tb, F), lambda i: (i, 0)),   # x tile, native layout
                const(w1),                                 # (40, 10)
                const(b1),                                 # (40, 1)
                const(w2),                                 # (40, 40)
                const(b2),                                 # (40, 1)
                const(w3),                                 # (1, 40)
            ],
            out_specs=pl.BlockSpec((1, tb), lambda i: (0, i)),
        ),
        compiler_params=pltpu.CompilerParams(
            dimension_semantics=("parallel",),             # megacore / v7x 2 TCs
        ),
        cost_estimate=cost,
    )(x, w1, b1, w2, b2, w3)

    return out[0, :B].reshape(B, 1)


def init_params(key):
    """Deterministic init mimicking torch.nn.Linear defaults
    (uniform(-1/sqrt(fan_in), 1/sqrt(fan_in))), stored torch-style (out, in)."""
    k1, k2, k3, k4, k5 = jax.random.split(key, 5)

    def u(k, shape, fan_in):
        bound = 1.0 / math.sqrt(fan_in)
        return jax.random.uniform(k, shape, jnp.float32, -bound, bound)

    w1 = u(k1, (40, 10), 10)
    b1 = u(k2, (40, 1), 10)
    w2 = u(k3, (40, 40), 40)
    b2 = u(k4, (40, 1), 40)
    w3 = u(k5, (1, 40), 40)        # Linear(40, 1, bias=False)
    return (w1, b1, w2, b2, w3)


def reference_forward(x, params):
    w1, b1, w2, b2, w3 = params
    h1 = jnp.maximum(x @ w1.T + b1[:, 0], 0.0)
    h2 = jnp.maximum(h1 @ w2.T + b2[:, 0], 0.0)
    return jax.nn.sigmoid(h2 @ w3.T)


if __name__ == "__main__":
    key = jax.random.PRNGKey(0)
    pkey, xkey1, xkey2 = jax.random.split(key, 3)
    params = init_params(pkey)

    # Small batch: single 128-lane tile, single inner chunk.
    x_small = jax.random.normal(xkey1, (8, 10), jnp.float32)
    out_small = jax.block_until_ready(mlp_forward(x_small, params))
    ref_small = reference_forward(x_small, params)
    assert out_small.shape == (8, 1), out_small.shape
    assert jnp.allclose(out_small, ref_small, atol=1e-5, rtol=1e-5), (
        f"max err {float(jnp.max(jnp.abs(out_small - ref_small)))}"
    )

    # Larger batch: 2 pipelined grid steps (v7x-friendly), ragged tail padding,
    # and multiple unrolled 128-lane chunks per tile (777 -> 2 x 512).
    x_big = jax.random.normal(xkey2, (777, 10), jnp.float32)
    out_big = jax.block_until_ready(mlp_forward(x_big, params))
    ref_big = reference_forward(x_big, params)
    assert out_big.shape == (777, 1), out_big.shape
    assert jnp.allclose(out_big, ref_big, atol=1e-5, rtol=1e-5), (
        f"max err {float(jnp.max(jnp.abs(out_big - ref_big)))}"
    )

    print("KERNEL_OK")
</pallas_src>

<mosaic_0001>
module attributes {stable_mosaic.version = 11 : i64} {
  func.func @_mlp_kernel(%arg0: i32, %arg1: memref<128x10xf32, #tpu.memory_space<vmem>>, %arg2: memref<40x10xf32, #tpu.memory_space<vmem>>, %arg3: memref<40x1xf32, #tpu.memory_space<vmem>>, %arg4: memref<40x40xf32, #tpu.memory_space<vmem>>, %arg5: memref<40x1xf32, #tpu.memory_space<vmem>>, %arg6: memref<1x40xf32, #tpu.memory_space<vmem>>, %arg7: memref<1x128xf32, #tpu.memory_space<vmem>>) attributes {dimension_semantics = [#tpu.dimension_semantics<parallel>], iteration_bounds = array<i64: 1>, scalar_prefetch = 0 : i64, scratch_operands = 0 : i64, tpu.core_type = #tpu.core_type<tc>, window_params = [{transform_indices = @transform_0, window_bounds = array<i64: 128, 10>}, {pipeline_mode = #tpu.pipeline_mode<synchronous>, transform_indices = @transform_1, window_bounds = array<i64: 40, 10>}, {pipeline_mode = #tpu.pipeline_mode<synchronous>, transform_indices = @transform_2, window_bounds = array<i64: 40, 1>}, {pipeline_mode = #tpu.pipeline_mode<synchronous>, transform_indices = @transform_3, window_bounds = array<i64: 40, 40>}, {pipeline_mode = #tpu.pipeline_mode<synchronous>, transform_indices = @transform_4, window_bounds = array<i64: 40, 1>}, {pipeline_mode = #tpu.pipeline_mode<synchronous>, transform_indices = @transform_5, window_bounds = array<i64: 1, 40>}, {transform_indices = @transform_6, window_bounds = array<i64: 1, 128>}]} {
    %c0 = arith.constant 0 : index
    %c0_0 = arith.constant 0 : index
    %0 = vector.load %arg2[%c0, %c0_0] : memref<40x10xf32, #tpu.memory_space<vmem>>, vector<40x10xf32>
    %c0_1 = arith.constant 0 : index
    %c0_2 = arith.constant 0 : index
    %1 = vector.load %arg3[%c0_1, %c0_2] : memref<40x1xf32, #tpu.memory_space<vmem>>, vector<40x1xf32>
    %c0_3 = arith.constant 0 : index
    %c0_4 = arith.constant 0 : index
    %2 = vector.load %arg4[%c0_3, %c0_4] : memref<40x40xf32, #tpu.memory_space<vmem>>, vector<40x40xf32>
    %c0_5 = arith.constant 0 : index
    %c0_6 = arith.constant 0 : index
    %3 = vector.load %arg5[%c0_5, %c0_6] : memref<40x1xf32, #tpu.memory_space<vmem>>, vector<40x1xf32>
    %c0_7 = arith.constant 0 : index
    %c0_8 = arith.constant 0 : index
    %4 = vector.load %arg6[%c0_7, %c0_8] : memref<1x40xf32, #tpu.memory_space<vmem>>, vector<1x40xf32>
    %c0_9 = arith.constant 0 : index
    %c0_10 = arith.constant 0 : index
    %5 = vector.load %arg1[%c0_9, %c0_10] : memref<128x10xf32, #tpu.memory_space<vmem>>, vector<128x10xf32>
    %cst = arith.constant dense<0.000000e+00> : vector<40x128xf32>
    %6 = tpu.matmul %0, %5, %cst {dimension_numbers = #tpu.dot_dimension_numbers<[1], [1], [0], [0], [0, 0, 1, 0], [], []>} : vector<40x10xf32>, vector<128x10xf32>, vector<40x128xf32> -> vector<40x128xf32>
    %7 = vector.broadcast %1 : vector<40x1xf32> to vector<40x128xf32>
    %8 = arith.addf %6, %7 : vector<40x128xf32>
    %cst_11 = arith.constant 0.000000e+00 : f32
    %9 = vector.broadcast %cst_11 : f32 to vector<40x128xf32>
    %10 = arith.maximumf %8, %9 : vector<40x128xf32>
    %cst_12 = arith.constant dense<0.000000e+00> : vector<40x128xf32>
    %11 = tpu.matmul %2, %10, %cst_12 {dimension_numbers = #tpu.dot_dimension_numbers<[1], [0], [0], [1], [0, 0, 1, 1], [], []>} : vector<40x40xf32>, vector<40x128xf32>, vector<40x128xf32> -> vector<40x128xf32>
    %12 = vector.broadcast %3 : vector<40x1xf32> to vector<40x128xf32>
    %13 = arith.addf %11, %12 : vector<40x128xf32>
    %cst_13 = arith.constant 0.000000e+00 : f32
    %14 = vector.broadcast %cst_13 : f32 to vector<40x128xf32>
    %15 = arith.maximumf %13, %14 : vector<40x128xf32>
    %cst_14 = arith.constant dense<0.000000e+00> : vector<1x128xf32>
    %16 = tpu.matmul %4, %15, %cst_14 {dimension_numbers = #tpu.dot_dimension_numbers<[1], [0], [0], [1], [0, 0, 1, 1], [], []>} : vector<1x40xf32>, vector<40x128xf32>, vector<1x128xf32> -> vector<1x128xf32>
    %17 = arith.negf %16 : vector<1x128xf32>
    %18 = math.exp %17 : vector<1x128xf32>
    %cst_15 = arith.constant 1.000000e+00 : f32
    %19 = vector.broadcast %cst_15 : f32 to vector<1x128xf32>
    %20 = arith.addf %19, %18 : vector<1x128xf32>
    %21 = arith.divf %19, %20 : vector<1x128xf32>
    %c0_16 = arith.constant 0 : index
    %c0_17 = arith.constant 0 : index
    %22 = vector.load %arg7[%c0_16, %c0_17] : memref<1x128xf32, #tpu.memory_space<vmem>>, vector<1x128xf32>
    tpu.vector_store %arg7[%c0_16, %c0_17], %21 {strides = array<i32>} : memref<1x128xf32, #tpu.memory_space<vmem>>, vector<1x128xf32>,
    return
  }
  func.func @transform_0(%arg0: i32) -> (i32, i32) {
    %c0_i32 = arith.constant 0 : i32
    %c0_i32_0 = arith.constant 0 : i32
    return %arg0, %c0_i32 : i32, i32
  }
  func.func @transform_1(%arg0: i32) -> (i32, i32) {
    %c0_i32 = arith.constant 0 : i32
    %c0_i32_0 = arith.constant 0 : i32
    %c0_i32_1 = arith.constant 0 : i32
    return %c0_i32, %c0_i32_0 : i32, i32
  }
  func.func @transform_2(%arg0: i32) -> (i32, i32) {
    %c0_i32 = arith.constant 0 : i32
    %c0_i32_0 = arith.constant 0 : i32
    %c0_i32_1 = arith.constant 0 : i32
    return %c0_i32, %c0_i32_0 : i32, i32
  }
  func.func @transform_3(%arg0: i32) -> (i32, i32) {
    %c0_i32 = arith.constant 0 : i32
    %c0_i32_0 = arith.constant 0 : i32
    %c0_i32_1 = arith.constant 0 : i32
    return %c0_i32, %c0_i32_0 : i32, i32
  }
  func.func @transform_4(%arg0: i32) -> (i32, i32) {
    %c0_i32 = arith.constant 0 : i32
    %c0_i32_0 = arith.constant 0 : i32
    %c0_i32_1 = arith.constant 0 : i32
    return %c0_i32, %c0_i32_0 : i32, i32
  }
  func.func @transform_5(%arg0: i32) -> (i32, i32) {
    %c0_i32 = arith.constant 0 : i32
    %c0_i32_0 = arith.constant 0 : i32
    %c0_i32_1 = arith.constant 0 : i32
    return %c0_i32, %c0_i32_0 : i32, i32
  }
  func.func @transform_6(%arg0: i32) -> (i32, i32) {
    %c0_i32 = arith.constant 0 : i32
    %c0_i32_0 = arith.constant 0 : i32
    return %c0_i32, %arg0 : i32, i32
  }
}

</mosaic_0001>

<llo_original>
// kernel: mlp_forward.1
$region0: #{mlp_forward.1}
  #allocation0 [shape = 'u32[]', space=smem, size = 0x4, offset = 0x4, fixed_abs, tag = 'smem constant byte address 0x4 - core index']
  #allocation1 [shape = 'u32[144,128]{1,0:T(1,128)}', space=vmem, size = 0x12000, scoped, tag = 'internal scratch']
  %s0 = inlined_call_operand.vmem [shape: f32[128,10], index: 0, kind: input, shape index: {}]
  %s1 = inlined_call_operand.vmem [shape: f32[40,10], index: 1, kind: input, shape index: {}]
  %s2 = inlined_call_operand.vmem [shape: f32[40,1], index: 2, kind: input, shape index: {}]
  %s3 = inlined_call_operand.vmem [shape: f32[40,40], index: 3, kind: input, shape index: {}]
  %s4 = inlined_call_operand.vmem [shape: f32[40,1], index: 4, kind: input, shape index: {}]
  %s5 = inlined_call_operand.vmem [shape: f32[1,40], index: 5, kind: input, shape index: {}]
  %s6 = inlined_call_operand.vmem [shape: f32[1,128], index: 6, kind: output, shape index: {}]
  %s7 = sld [smem:[#allocation0]]
  $region34: #{mlp_forward.1} parent=0
    _
  %s9 = ssub.s32 1, %s7
  %s10 = scalar_select 0, %s9, %s7
  // Predicated region
  $region2: #{mlp_forward.1} parent=0 // pred_check
    _
  $region3: #{mlp_forward.1} parent=0 // pred_check_branch
    %12 = sbr.rel (0) target = $region5
  $region4: #{mlp_forward.1} parent=0 // pred_region
    _
  $region5: #{mlp_forward.1} parent=0 // pred_fallthru
    _
  // Predicated region
  $region6: #{mlp_forward.1} parent=0 // pred_check
    _
  $region7: #{mlp_forward.1} parent=0 // pred_check_branch
    %14 = sbr.rel (0) target = $region9
  $region8: #{mlp_forward.1} parent=0 // pred_region
    _
  $region9: #{mlp_forward.1} parent=0 // pred_fallthru
    _
  // Predicated region
  $region10: #{mlp_forward.1} parent=0 // pred_check
    _
  $region11: #{mlp_forward.1} parent=0 // pred_check_branch
    %16 = sbr.rel (0) target = $region13
  $region12: #{mlp_forward.1} parent=0 // pred_region
    _
  $region13: #{mlp_forward.1} parent=0 // pred_fallthru
    _
  // Predicated region
  $region14: #{mlp_forward.1} parent=0 // pred_check
    _
  $region15: #{mlp_forward.1} parent=0 // pred_check_branch
    %18 = sbr.rel (0) target = $region17
  $region16: #{mlp_forward.1} parent=0 // pred_region
    _
  $region17: #{mlp_forward.1} parent=0 // pred_fallthru
    _
  // Predicated region
  $region18: #{mlp_forward.1} parent=0 // pred_check
    _
  $region19: #{mlp_forward.1} parent=0 // pred_check_branch
    %20 = sbr.rel (0) target = $region21
  $region20: #{mlp_forward.1} parent=0 // pred_region
    _
  $region21: #{mlp_forward.1} parent=0 // pred_fallthru
    _
  // Predicated region
  $region22: #{mlp_forward.1} parent=0 // pred_check
    _
  $region23: #{mlp_forward.1} parent=0 // pred_check_branch
    %22 = sbr.rel (0) target = $region25
  $region24: #{mlp_forward.1} parent=0 // pred_region
    _
  $region25: #{mlp_forward.1} parent=0 // pred_fallthru
    _
  %v23 = vld [vmem:[%s1] sm:$0xff]
  %v24 = vld [vmem:[%s1 + $0x8] sm:$0xff]
  %v25 = vld [vmem:[%s1 + $0x10] sm:$0xff]
  %v26 = vld [vmem:[%s1 + $0x18] sm:$0xff]
  %v27 = vld [vmem:[%s1 + $0x20] sm:$0xff]
  %v28 = vld [vmem:[%s2] sm:$0xff]
  %v29 = vld [vmem:[%s2 + $0x8] sm:$0xff]
  %v30 = vld [vmem:[%s2 + $0x10] sm:$0xff]
  %v31 = vld [vmem:[%s2 + $0x18] sm:$0xff]
  %v32 = vld [vmem:[%s2 + $0x20] sm:$0xff]
  %v33 = vld [vmem:[%s3] sm:$0xff]
  %v34 = vld [vmem:[%s3 + $0x8] sm:$0xff]
  %v35 = vld [vmem:[%s3 + $0x10] sm:$0xff]
  %v36 = vld [vmem:[%s3 + $0x18] sm:$0xff]
  %v37 = vld [vmem:[%s3 + $0x20] sm:$0xff]
  %v38 = vld [vmem:[%s4] sm:$0xff]
  %v39 = vld [vmem:[%s4 + $0x8] sm:$0xff]
  %v40 = vld [vmem:[%s4 + $0x10] sm:$0xff]
  %v41 = vld [vmem:[%s4 + $0x18] sm:$0xff]
  %v42 = vld [vmem:[%s4 + $0x20] sm:$0xff]
  %v43 = vld [vmem:[%s5] sm:$0x1]
  %v44 = vld [vmem:[%s0] sm:$0xff]
  %v45 = vld [vmem:[%s0 + $0x8] sm:$0xff]
  %v46 = vld [vmem:[%s0 + $0x10] sm:$0xff]
  %v47 = vld [vmem:[%s0 + $0x18] sm:$0xff]
  %v48 = vld [vmem:[%s0 + $0x20] sm:$0xff]
  %v49 = vld [vmem:[%s0 + $0x28] sm:$0xff]
  %v50 = vld [vmem:[%s0 + $0x30] sm:$0xff]
  %v51 = vld [vmem:[%s0 + $0x38] sm:$0xff]
  %v52 = vld [vmem:[%s0 + $0x40] sm:$0xff]
  %v53 = vld [vmem:[%s0 + $0x48] sm:$0xff]
  %v54 = vld [vmem:[%s0 + $0x50] sm:$0xff]
  %v55 = vld [vmem:[%s0 + $0x58] sm:$0xff]
  %v56 = vld [vmem:[%s0 + $0x60] sm:$0xff]
  %v57 = vld [vmem:[%s0 + $0x68] sm:$0xff]
  %v58 = vld [vmem:[%s0 + $0x70] sm:$0xff]
  %v59 = vld [vmem:[%s0 + $0x78] sm:$0xff]
  %61 = vset.pattern.permute.xlu0 0
  %62 = vperm.xlu0 %61, %v28
  %v63 = vpop.permute.xlu0 %62
  %66 = vset.pattern.permute.xlu0 0
  %67 = vperm.xlu0 %66, %v29
  %v68 = vpop.permute.xlu0 %67
  %71 = vset.pattern.permute.xlu0 0
  %72 = vperm.xlu0 %71, %v30
  %v73 = vpop.permute.xlu0 %72
  %76 = vset.pattern.permute.xlu0 0
  %77 = vperm.xlu0 %76, %v31
  %v78 = vpop.permute.xlu0 %77
  %81 = vset.pattern.permute.xlu0 0
  %82 = vperm.xlu0 %81, %v32
  %v83 = vpop.permute.xlu0 %82
  %vm85 = vcmask 80896
  %v87 = vsel %vm85, %v23, 0
  %v90 = vsel %vm85, %v24, 0
  %v93 = vsel %vm85, %v25, 0
  %v96 = vsel %vm85, %v26, 0
  %v99 = vsel %vm85, %v27, 0
  %v102 = vsel %vm85, %v44, 0
  %v105 = vsel %vm85, %v45, 0
  %v108 = vsel %vm85, %v46, 0
  %v111 = vsel %vm85, %v47, 0
  %v114 = vsel %vm85, %v48, 0
  %v117 = vsel %vm85, %v49, 0
  %v120 = vsel %vm85, %v50, 0
  %v123 = vsel %vm85, %v51, 0
  %v126 = vsel %vm85, %v52, 0
  %v129 = vsel %vm85, %v53, 0
  %v132 = vsel %vm85, %v54, 0
  %v135 = vsel %vm85, %v55, 0
  %v138 = vsel %vm85, %v56, 0
  %v141 = vsel %vm85, %v57, 0
  %v144 = vsel %vm85, %v58, 0
  %v147 = vsel %vm85, %v59, 0
  %149 = vmatprep.subr.mxu0 0.0
  %150 = vmatpush1.xpose.msra.mxu0 %v102
  %151 = vmatprep.subr.mxu0 0.0
  %152 = vmatpush1.xpose.msra.mxu0 %v105
  %153 = vmatprep.subr.mxu0 0.0
  %154 = vmatpush1.xpose.msra.mxu0 %v108
  %155 = vmatprep.subr.mxu0 0.0
  %156 = vmatpush1.xpose.msra.mxu0 %v111
  %157 = vmatprep.subr.mxu0 0.0
  %158 = vmatpush1.xpose.msra.mxu0 %v114
  %159 = vmatprep.subr.mxu0 0.0
  %160 = vmatpush1.xpose.msra.mxu0 %v117
  %161 = vmatprep.subr.mxu0 0.0
  %162 = vmatpush1.xpose.msra.mxu0 %v120
  %163 = vmatprep.subr.mxu0 0.0
  %164 = vmatpush1.xpose.msra.mxu0 %v123
  %165 = vmatprep.subr.mxu0 0.0
  %166 = vmatpush1.xpose.msra.mxu0 %v126
  %167 = vmatprep.subr.mxu0 0.0
  %168 = vmatpush1.xpose.msra.mxu0 %v129
  %169 = vmatprep.subr.mxu0 0.0
  %170 = vmatpush1.xpose.msra.mxu0 %v132
  %171 = vmatprep.subr.mxu0 0.0
  %172 = vmatpush1.xpose.msra.mxu0 %v135
  %173 = vmatprep.subr.mxu0 0.0
  %174 = vmatpush1.xpose.msra.mxu0 %v138
  %175 = vmatprep.subr.mxu0 0.0
  %176 = vmatpush1.xpose.msra.mxu0 %v141
  %177 = vmatprep.subr.mxu0 0.0
  %178 = vmatpush1.xpose.msra.mxu0 %v144
  %179 = vmatprep.subr.mxu0 0.0
  %180 = vmatpush1.xpose.msra.mxu0 %v147
  %181 = vmatprep.subr.mxu0 0.0
  %182 = vmatpush1.xpose.msra.mxu0 0.0
  %183 = vmatprep.subr.mxu0 0.0
  %184 = vmatpush1.xpose.msra.mxu0 0.0
  %185 = vmatprep.subr.mxu0 0.0
  %186 = vmatpush1.xpose.msra.mxu0 0.0
  %187 = vmatprep.subr.mxu0 0.0
  %188 = vmatpush1.xpose.msra.mxu0 0.0
  %189 = vmatprep.subr.mxu0 0.0
  %190 = vmatpush1.xpose.msra.mxu0 0.0
  %191 = vmatprep.subr.mxu0 0.0
  %192 = vmatpush1.xpose.msra.mxu0 0.0
  %193 = vmatprep.subr.mxu0 0.0
  %194 = vmatpush1.xpose.msra.mxu0 0.0
  %195 = vmatprep.subr.mxu0 0.0
  %196 = vmatpush1.xpose.msra.mxu0 0.0
  %197 = vmatprep.subr.mxu0 0.0
  %198 = vmatpush1.xpose.msra.mxu0 0.0
  %199 = vmatprep.subr.mxu0 0.0
  %200 = vmatpush1.xpose.msra.mxu0 0.0
  %201 = vmatprep.subr.mxu0 0.0
  %202 = vmatpush1.xpose.msra.mxu0 0.0
  %203 = vmatprep.subr.mxu0 0.0
  %204 = vmatpush1.xpose.msra.mxu0 0.0
  %205 = vmatprep.subr.mxu0 0.0
  %206 = vmatpush1.xpose.msra.mxu0 0.0
  %207 = vmatprep.subr.mxu0 0.0
  %208 = vmatpush1.xpose.msra.mxu0 0.0
  %209 = vmatprep.subr.mxu0 0.0
  %210 = vmatpush1.xpose.msra.mxu0 0.0
  %211 = vmatprep.subr.mxu0 0.0
  %212 = vmatpush1.xpose.msra.mxu0 0.0
  %213 = vmatprep.mubr.f32.mxu0 0.0
  %214 = vmatmul.mubr.f32.gmra.mrb[0].mxu0 %v87
  %v215 = vpop.f32.mrb[0].mxu0
  %v216 = vadd.f32 %v63, %v215
  %v217 = vpop.f32.mrb[0].mxu0
  %218 = vmatprep.mubr.f32.mxu0 0.0
  %219 = vmatmul.mubr.f32.gmra.mrb[0].mxu0 %v90
  %v220 = vpop.f32.mrb[0].mxu0
  %v221 = vadd.f32 %v68, %v220
  %v222 = vpop.f32.mrb[0].mxu0
  %223 = vmatprep.mubr.f32.mxu0 0.0
  %224 = vmatmul.mubr.f32.gmra.mrb[0].mxu0 %v93
  %v225 = vpop.f32.mrb[0].mxu0
  %v226 = vadd.f32 %v73, %v225
  %v227 = vpop.f32.mrb[0].mxu0
  %228 = vmatprep.mubr.f32.mxu0 0.0
  %229 = vmatmul.mubr.f32.gmra.mrb[0].mxu0 %v96
  %v230 = vpop.f32.mrb[0].mxu0
  %v231 = vadd.f32 %v78, %v230
  %v232 = vpop.f32.mrb[0].mxu0
  %233 = vmatprep.mubr.f32.mxu0 0.0
  %234 = vmatmul.mubr.f32.gmra.mrb[0].mxu0 %v99
  %v235 = vpop.f32.mrb[0].mxu0
  %v236 = vadd.f32 %v83, %v235
  %v237 = vpop.f32.mrb[0].mxu0
  %238 = vdwg.mxu0
  %v239 = vmax.f32 %v216, 0.0
  %v240 = vmax.f32 %v221, 0.0
  %v241 = vmax.f32 %v226, 0.0
  %v242 = vmax.f32 %v231, 0.0
  %v243 = vmax.f32 %v236, 0.0
  %245 = vset.pattern.permute.xlu0 0
  %246 = vperm.xlu0 %245, %v38
  %v247 = vpop.permute.xlu0 %246
  %250 = vset.pattern.permute.xlu0 0
  %251 = vperm.xlu0 %250, %v39
  %v252 = vpop.permute.xlu0 %251
  %255 = vset.pattern.permute.xlu0 0
  %256 = vperm.xlu0 %255, %v40
  %v257 = vpop.permute.xlu0 %256
  %260 = vset.pattern.permute.xlu0 0
  %261 = vperm.xlu0 %260, %v41
  %v262 = vpop.permute.xlu0 %261
  %265 = vset.pattern.permute.xlu0 0
  %266 = vperm.xlu0 %265, %v42
  %v267 = vpop.permute.xlu0 %266
  %vm269 = vcmask 326656
  %v271 = vsel %vm269, %v33, 0
  %v274 = vsel %vm269, %v34, 0
  %v277 = vsel %vm269, %v35, 0
  %v280 = vsel %vm269, %v36, 0
  %v283 = vsel %vm269, %v37, 0
  %285 = vmatprep.subr.mxu0 0.0
  %286 = vmatpush1.msra.mxu0 %v239
  %287 = vmatprep.subr.mxu0 0.0
  %288 = vmatpush1.msra.mxu0 %v240
  %289 = vmatprep.subr.mxu0 0.0
  %290 = vmatpush1.msra.mxu0 %v241
  %291 = vmatprep.subr.mxu0 0.0
  %292 = vmatpush1.msra.mxu0 %v242
  %293 = vmatprep.subr.mxu0 0.0
  %294 = vmatpush1.msra.mxu0 %v243
  %295 = vmatprep.subr.mxu0 0.0
  %296 = vmatpush1.msra.mxu0 0.0
  %297 = vmatprep.subr.mxu0 0.0
  %298 = vmatpush1.msra.mxu0 0.0
  %299 = vmatprep.subr.mxu0 0.0
  %300 = vmatpush1.msra.mxu0 0.0
  %301 = vmatprep.subr.mxu0 0.0
  %302 = vmatpush1.msra.mxu0 0.0
  %303 = vmatprep.subr.mxu0 0.0
  %304 = vmatpush1.msra.mxu0 0.0
  %305 = vmatprep.subr.mxu0 0.0
  %306 = vmatpush1.msra.mxu0 0.0
  %307 = vmatprep.subr.mxu0 0.0
  %308 = vmatpush1.msra.mxu0 0.0
  %309 = vmatprep.subr.mxu0 0.0
  %310 = vmatpush1.msra.mxu0 0.0
  %311 = vmatprep.subr.mxu0 0.0
  %312 = vmatpush1.msra.mxu0 0.0
  %313 = vmatprep.subr.mxu0 0.0
  %314 = vmatpush1.msra.mxu0 0.0
  %315 = vmatprep.subr.mxu0 0.0
  %316 = vmatpush1.msra.mxu0 0.0
  %317 = vmatprep.subr.mxu0 0.0
  %318 = vmatpush1.msra.mxu0 0.0
  %319 = vmatprep.subr.mxu0 0.0
  %320 = vmatpush1.msra.mxu0 0.0
  %321 = vmatprep.subr.mxu0 0.0
  %322 = vmatpush1.msra.mxu0 0.0
  %323 = vmatprep.subr.mxu0 0.0
  %324 = vmatpush1.msra.mxu0 0.0
  %325 = vmatprep.subr.mxu0 0.0
  %326 = vmatpush1.msra.mxu0 0.0
  %327 = vmatprep.subr.mxu0 0.0
  %328 = vmatpush1.msra.mxu0 0.0
  %329 = vmatprep.subr.mxu0 0.0
  %330 = vmatpush1.msra.mxu0 0.0
  %331 = vmatprep.subr.mxu0 0.0
  %332 = vmatpush1.msra.mxu0 0.0
  %333 = vmatprep.subr.mxu0 0.0
  %334 = vmatpush1.msra.mxu0 0.0
  %335 = vmatprep.subr.mxu0 0.0
  %336 = vmatpush1.msra.mxu0 0.0
  %337 = vmatprep.subr.mxu0 0.0
  %338 = vmatpush1.msra.mxu0 0.0
  %339 = vmatprep.subr.mxu0 0.0
  %340 = vmatpush1.msra.mxu0 0.0
  %341 = vmatprep.subr.mxu0 0.0
  %342 = vmatpush1.msra.mxu0 0.0
  %343 = vmatprep.subr.mxu0 0.0
  %344 = vmatpush1.msra.mxu0 0.0
  %345 = vmatprep.subr.mxu0 0.0
  %346 = vmatpush1.msra.mxu0 0.0
  %347 = vmatprep.subr.mxu0 0.0
  %348 = vmatpush1.msra.mxu0 0.0
  %349 = vmatprep.mubr.f32.mxu0 0.0
  %350 = vmatmul.mubr.f32.gmra.mrb[0].mxu0 %v271
  %v351 = vpop.f32.mrb[0].mxu0
  %v352 = vadd.f32 %v247, %v351
  %v353 = vpop.f32.mrb[0].mxu0
  %354 = vmatprep.mubr.f32.mxu0 0.0
  %355 = vmatmul.mubr.f32.gmra.mrb[0].mxu0 %v274
  %v356 = vpop.f32.mrb[0].mxu0
  %v357 = vadd.f32 %v252, %v356
  %v358 = vpop.f32.mrb[0].mxu0
  %359 = vmatprep.mubr.f32.mxu0 0.0
  %360 = vmatmul.mubr.f32.gmra.mrb[0].mxu0 %v277
  %v361 = vpop.f32.mrb[0].mxu0
  %v362 = vadd.f32 %v257, %v361
  %v363 = vpop.f32.mrb[0].mxu0
  %364 = vmatprep.mubr.f32.mxu0 0.0
  %365 = vmatmul.mubr.f32.gmra.mrb[0].mxu0 %v280
  %v366 = vpop.f32.mrb[0].mxu0
  %v367 = vadd.f32 %v262, %v366
  %v368 = vpop.f32.mrb[0].mxu0
  %369 = vmatprep.mubr.f32.mxu0 0.0
  %370 = vmatmul.mubr.f32.gmra.mrb[0].mxu0 %v283
  %v371 = vpop.f32.mrb[0].mxu0
  %v372 = vadd.f32 %v267, %v371
  %v373 = vpop.f32.mrb[0].mxu0
  %374 = vdwg.mxu0
  %v375 = vmax.f32 %v352, 0.0
  %v376 = vmax.f32 %v357, 0.0
  %v377 = vmax.f32 %v362, 0.0
  %v378 = vmax.f32 %v367, 0.0
  %v379 = vmax.f32 %v372, 0.0
  %v381 = vsel %vm269, %v43, 0
  %383 = vmatprep.subr.mxu0 0.0
  %384 = vmatpush1.msra.mxu0 %v375
  %385 = vmatprep.subr.mxu0 0.0
  %386 = vmatpush1.msra.mxu0 %v376
  %387 = vmatprep.subr.mxu0 0.0
  %388 = vmatpush1.msra.mxu0 %v377
  %389 = vmatprep.subr.mxu0 0.0
  %390 = vmatpush1.msra.mxu0 %v378
  %391 = vmatprep.subr.mxu0 0.0
  %392 = vmatpush1.msra.mxu0 %v379
  %393 = vmatprep.subr.mxu0 0.0
  %394 = vmatpush1.msra.mxu0 0.0
  %395 = vmatprep.subr.mxu0 0.0
  %396 = vmatpush1.msra.mxu0 0.0
  %397 = vmatprep.subr.mxu0 0.0
  %398 = vmatpush1.msra.mxu0 0.0
  %399 = vmatprep.subr.mxu0 0.0
  %400 = vmatpush1.msra.mxu0 0.0
  %401 = vmatprep.subr.mxu0 0.0
  %402 = vmatpush1.msra.mxu0 0.0
  %403 = vmatprep.subr.mxu0 0.0
  %404 = vmatpush1.msra.mxu0 0.0
  %405 = vmatprep.subr.mxu0 0.0
  %406 = vmatpush1.msra.mxu0 0.0
  %407 = vmatprep.subr.mxu0 0.0
  %408 = vmatpush1.msra.mxu0 0.0
  %409 = vmatprep.subr.mxu0 0.0
  %410 = vmatpush1.msra.mxu0 0.0
  %411 = vmatprep.subr.mxu0 0.0
  %412 = vmatpush1.msra.mxu0 0.0
  %413 = vmatprep.subr.mxu0 0.0
  %414 = vmatpush1.msra.mxu0 0.0
  %415 = vmatprep.subr.mxu0 0.0
  %416 = vmatpush1.msra.mxu0 0.0
  %417 = vmatprep.subr.mxu0 0.0
  %418 = vmatpush1.msra.mxu0 0.0
  %419 = vmatprep.subr.mxu0 0.0
  %420 = vmatpush1.msra.mxu0 0.0
  %421 = vmatprep.subr.mxu0 0.0
  %422 = vmatpush1.msra.mxu0 0.0
  %423 = vmatprep.subr.mxu0 0.0
  %424 = vmatpush1.msra.mxu0 0.0
  %425 = vmatprep.subr.mxu0 0.0
  %426 = vmatpush1.msra.mxu0 0.0
  %427 = vmatprep.subr.mxu0 0.0
  %428 = vmatpush1.msra.mxu0 0.0
  %429 = vmatprep.subr.mxu0 0.0
  %430 = vmatpush1.msra.mxu0 0.0
  %431 = vmatprep.subr.mxu0 0.0
  %432 = vmatpush1.msra.mxu0 0.0
  %433 = vmatprep.subr.mxu0 0.0
  %434 = vmatpush1.msra.mxu0 0.0
  %435 = vmatprep.subr.mxu0 0.0
  %436 = vmatpush1.msra.mxu0 0.0
  %437 = vmatprep.subr.mxu0 0.0
  %438 = vmatpush1.msra.mxu0 0.0
  %439 = vmatprep.subr.mxu0 0.0
  %440 = vmatpush1.msra.mxu0 0.0
  %441 = vmatprep.subr.mxu0 0.0
  %442 = vmatpush1.msra.mxu0 0.0
  %443 = vmatprep.subr.mxu0 0.0
  %444 = vmatpush1.msra.mxu0 0.0
  %445 = vmatprep.subr.mxu0 0.0
  %446 = vmatpush1.msra.mxu0 0.0
  %447 = vmatprep.mubr.f32.mxu0 0.0
  %448 = vmatmul.mubr.f32.gmra.mrb[0].mxu0 %v381
  %v449 = vpop.f32.mrb[0].mxu0
  %v450 = vadd.f32 0.0, %v449
  %v451 = vpop.f32.mrb[0].mxu0
  %452 = vdwg.mxu0
  %v453 = vxor.u32 %v450, 2147483648
  %v454 = vmul.f32 %v453, 1.442695
  %v455 = vpow.pop %v454
  %v456 = vadd.f32 %v455, 1.0
  %v457 = vrcp.pop %v456
  %v458 = vmul.f32 1.0, %v457
  %459 = vst [vmem:[%s6] sm:$0x1] %v458
  // Predicated region
  $region26: #{mlp_forward.1} parent=0 // pred_check
    _
  $region27: #{mlp_forward.1} parent=0 // pred_check_branch
    %461 = sbr.rel (0) target = $region29
  $region28: #{mlp_forward.1} parent=0 // pred_region
    _
  $region29: #{mlp_forward.1} parent=0 // pred_fallthru
    _
  // Predicated region
  $region30: #{mlp_forward.1} parent=0 // pred_check
    _
  $region31: #{mlp_forward.1} parent=0 // pred_check_branch
    %463 = sbr.rel (0) target = $region33
  $region32: #{mlp_forward.1} parent=0 // pred_region
    _
  $region33: #{mlp_forward.1} parent=0 // pred_fallthru
    _

</llo_original>
